<compile_context>
chip_gen: v6e
topology: v6e:2x2x1
jax: 0.10.0
libtpu: 0.0.40
codegen_flags: <defaults>
</compile_context>

<pallas_src>
import functools

import jax
import jax.numpy as jnp
from jax.experimental import pallas as pl
from jax.experimental.pallas import tpu as pltpu


def _round_up(x: int, m: int) -> int:
    return (x + m - 1) // m * m


# ---------------------------------------------------------------------------
# Kernel: one fused matmul + bias, then cos on the periodic columns only.
# ---------------------------------------------------------------------------
def _cosine_t2v_kernel(tau_ref, w_ref, b_ref, mask_ref, o_ref):
    # z = tau @ [w | w0 | 0pad] + [b | b0 | 0pad]   -> (block_rows, padded_h)
    z = jnp.dot(tau_ref[...], w_ref[...], preferred_element_type=jnp.float32)
    z = z + b_ref[...]
    # mask==1 -> periodic (cos) columns; mask==0 -> linear column + padding.
    o_ref[...] = jnp.where(mask_ref[...] != 0.0, jnp.cos(z), z)


# ---------------------------------------------------------------------------
# Wrapper: accepts tau with arbitrary leading dims (..., in_features).
# ---------------------------------------------------------------------------
def cosine_activation(tau, w, b, w0, b0, *, block_rows: int = 512):
    tau = jnp.asarray(tau, jnp.float32)
    lead_shape = tau.shape[:-1]
    in_features = tau.shape[-1]
    out_features = w.shape[1] + 1

    n = 1
    for d in lead_shape:
        n *= d
    tau2 = tau.reshape(n, in_features)

    # Fuse periodic and linear branches into one weight/bias, pad output
    # dimension to a lane-dense multiple of 128.
    padded_h = _round_up(out_features, 128)
    w_all = jnp.concatenate(
        [jnp.asarray(w, jnp.float32), jnp.asarray(w0, jnp.float32)], axis=1
    )                                                        # (in, out_features)
    w_all = jnp.pad(w_all, ((0, 0), (0, padded_h - out_features)))
    b_all = jnp.concatenate(
        [jnp.asarray(b, jnp.float32), jnp.asarray(b0, jnp.float32)], axis=0
    )
    b_all = jnp.pad(b_all, (0, padded_h - out_features))[None, :]  # (1, padded_h)

    # Precomputed cos-vs-linear column mask (first out_features-1 cols -> cos).
    col = jnp.arange(padded_h, dtype=jnp.int32)
    mask = (col < (out_features - 1)).astype(jnp.float32)[None, :]  # (1, padded_h)

    # Row tiling: 8-aligned blocks, padded so the grid divides evenly.
    block_n = min(block_rows, _round_up(max(n, 1), 8))
    n_pad = _round_up(max(n, 1), block_n)
    tau_p = jnp.pad(tau2, ((0, n_pad - n), (0, 0)))
    grid = (n_pad // block_n,)

    out = pl.pallas_call(
        _cosine_t2v_kernel,
        out_shape=jax.ShapeDtypeStruct((n_pad, padded_h), jnp.float32),
        grid=grid,
        in_specs=[
            pl.BlockSpec((block_n, in_features), lambda i: (i, 0)),
            pl.BlockSpec((in_features, padded_h), lambda i: (0, 0)),
            pl.BlockSpec((1, padded_h), lambda i: (0, 0)),
            pl.BlockSpec((1, padded_h), lambda i: (0, 0)),
        ],
        out_specs=pl.BlockSpec((block_n, padded_h), lambda i: (i, 0)),
        compiler_params=pltpu.CompilerParams(
            dimension_semantics=("parallel",),  # shards row blocks over v7x's 2 TCs
        ),
    )(tau_p, w_all, b_all, mask)

    return out[:n, :out_features].reshape(*lead_shape, out_features)


# ---------------------------------------------------------------------------
# Pure-JAX reference (mirrors the PyTorch t2v / CosineActivation exactly).
# ---------------------------------------------------------------------------
def cosine_activation_ref(tau, w, b, w0, b0):
    tau = jnp.asarray(tau, jnp.float32)
    v1 = jnp.cos(
        jnp.einsum("...i,ij->...j", tau, w, precision=jax.lax.Precision.HIGHEST) + b
    )
    v2 = jnp.einsum("...i,ij->...j", tau, w0, precision=jax.lax.Precision.HIGHEST) + b0
    return jnp.concatenate([v1, v2], axis=-1)


if __name__ == "__main__":
    # Small shapes consistent with the module: batch=2, seq=8, in_features=4,
    # out_features=32 (tau is (B, T, in_features) as used inside Time2Vec).
    B, T, IN_FEATURES, OUT_FEATURES = 2, 8, 4, 32

    key = jax.random.PRNGKey(0)
    k_tau, k_w0, k_b0, k_w, k_b = jax.random.split(key, 5)

    tau = jax.random.normal(k_tau, (B, T, IN_FEATURES), jnp.float32)
    w0 = jax.random.normal(k_w0, (IN_FEATURES, 1), jnp.float32)
    b0 = jax.random.normal(k_b0, (1,), jnp.float32)
    w = jax.random.normal(k_w, (IN_FEATURES, OUT_FEATURES - 1), jnp.float32)
    b = jax.random.normal(k_b, (OUT_FEATURES - 1,), jnp.float32)

    y = cosine_activation(tau, w, b, w0, b0)
    jax.block_until_ready(y)

    assert y.shape == (B, T, OUT_FEATURES), y.shape
    y_ref = cosine_activation_ref(tau, w, b, w0, b0)
    assert bool(jnp.all(jnp.isfinite(y)))
    assert bool(jnp.allclose(y, y_ref, atol=5e-2, rtol=5e-2)), (
        float(jnp.max(jnp.abs(y - y_ref)))
    )
    print("KERNEL_OK")
</pallas_src>

<mosaic_0001>
module attributes {stable_mosaic.version = 11 : i64} {
  func.func @_cosine_t2v_kernel(%arg0: i32, %arg1: memref<16x4xf32, #tpu.memory_space<vmem>>, %arg2: memref<4x128xf32, #tpu.memory_space<vmem>>, %arg3: memref<1x128xf32, #tpu.memory_space<vmem>>, %arg4: memref<1x128xf32, #tpu.memory_space<vmem>>, %arg5: memref<16x128xf32, #tpu.memory_space<vmem>>) attributes {dimension_semantics = [#tpu.dimension_semantics<parallel>], iteration_bounds = array<i64: 1>, scalar_prefetch = 0 : i64, scratch_operands = 0 : i64, tpu.core_type = #tpu.core_type<tc>, window_params = [{transform_indices = @transform_0, window_bounds = array<i64: 16, 4>}, {pipeline_mode = #tpu.pipeline_mode<synchronous>, transform_indices = @transform_1, window_bounds = array<i64: 4, 128>}, {pipeline_mode = #tpu.pipeline_mode<synchronous>, transform_indices = @transform_2, window_bounds = array<i64: 1, 128>}, {pipeline_mode = #tpu.pipeline_mode<synchronous>, transform_indices = @transform_3, window_bounds = array<i64: 1, 128>}, {transform_indices = @transform_4, window_bounds = array<i64: 16, 128>}]} {
    %c0 = arith.constant 0 : index
    %c0_0 = arith.constant 0 : index
    %0 = vector.load %arg1[%c0, %c0_0] : memref<16x4xf32, #tpu.memory_space<vmem>>, vector<16x4xf32>
    %c0_1 = arith.constant 0 : index
    %c0_2 = arith.constant 0 : index
    %1 = vector.load %arg2[%c0_1, %c0_2] : memref<4x128xf32, #tpu.memory_space<vmem>>, vector<4x128xf32>
    %cst = arith.constant dense<0.000000e+00> : vector<16x128xf32>
    %2 = tpu.matmul %0, %1, %cst {dimension_numbers = #tpu.dot_dimension_numbers<[1], [0], [0], [1], [0, 0, 1, 1], [], []>} : vector<16x4xf32>, vector<4x128xf32>, vector<16x128xf32> -> vector<16x128xf32>
    %c0_3 = arith.constant 0 : index
    %c0_4 = arith.constant 0 : index
    %3 = vector.load %arg3[%c0_3, %c0_4] : memref<1x128xf32, #tpu.memory_space<vmem>>, vector<1x128xf32>
    %4 = vector.broadcast %3 : vector<1x128xf32> to vector<16x128xf32>
    %5 = arith.addf %2, %4 : vector<16x128xf32>
    %c0_5 = arith.constant 0 : index
    %c0_6 = arith.constant 0 : index
    %6 = vector.load %arg4[%c0_5, %c0_6] : memref<1x128xf32, #tpu.memory_space<vmem>>, vector<1x128xf32>
    %cst_7 = arith.constant 0.000000e+00 : f32
    %7 = vector.broadcast %cst_7 : f32 to vector<1x128xf32>
    %8 = arith.cmpf one, %6, %7 : vector<1x128xf32>
    %9 = math.cos %5 : vector<16x128xf32>
    %10 = vector.shape_cast %8 : vector<1x128xi1> to vector<1x128xi1>
    %11 = vector.broadcast %10 : vector<1x128xi1> to vector<16x128xi1>
    %12 = arith.select %11, %9, %5 : vector<16x128xi1>, vector<16x128xf32>
    %c0_8 = arith.constant 0 : index
    %c0_9 = arith.constant 0 : index
    %13 = vector.load %arg5[%c0_8, %c0_9] : memref<16x128xf32, #tpu.memory_space<vmem>>, vector<16x128xf32>
    tpu.vector_store %arg5[%c0_8, %c0_9], %12 {strides = array<i32>} : memref<16x128xf32, #tpu.memory_space<vmem>>, vector<16x128xf32>,
    return
  }
  func.func @transform_0(%arg0: i32) -> (i32, i32) {
    %c0_i32 = arith.constant 0 : i32
    %c0_i32_0 = arith.constant 0 : i32
    return %arg0, %c0_i32 : i32, i32
  }
  func.func @transform_1(%arg0: i32) -> (i32, i32) {
    %c0_i32 = arith.constant 0 : i32
    %c0_i32_0 = arith.constant 0 : i32
    %c0_i32_1 = arith.constant 0 : i32
    return %c0_i32, %c0_i32_0 : i32, i32
  }
  func.func @transform_2(%arg0: i32) -> (i32, i32) {
    %c0_i32 = arith.constant 0 : i32
    %c0_i32_0 = arith.constant 0 : i32
    %c0_i32_1 = arith.constant 0 : i32
    return %c0_i32, %c0_i32_0 : i32, i32
  }
  func.func @transform_3(%arg0: i32) -> (i32, i32) {
    %c0_i32 = arith.constant 0 : i32
    %c0_i32_0 = arith.constant 0 : i32
    %c0_i32_1 = arith.constant 0 : i32
    return %c0_i32, %c0_i32_0 : i32, i32
  }
  func.func @transform_4(%arg0: i32) -> (i32, i32) {
    %c0_i32 = arith.constant 0 : i32
    %c0_i32_0 = arith.constant 0 : i32
    return %arg0, %c0_i32 : i32, i32
  }
}

</mosaic_0001>

<llo_original>
// kernel: tpu_custom_call.1
$region0: #{tpu_custom_call.1}
  #allocation0 [shape = 'u32[]', space=smem, size = 0x4, offset = 0x4, fixed_abs, tag = 'smem constant byte address 0x4 - core index']
  #allocation1 [shape = 'u32[144,128]{1,0:T(1,128)}', space=vmem, size = 0x12000, scoped, tag = 'internal scratch']
  %s0 = inlined_call_operand.vmem [shape: f32[16,4], index: 0, kind: input, shape index: {}]
  %s1 = inlined_call_operand.vmem [shape: f32[4,128], index: 1, kind: input, shape index: {}]
  %s2 = inlined_call_operand.vmem [shape: f32[1,128], index: 2, kind: input, shape index: {}]
  %s3 = inlined_call_operand.vmem [shape: f32[1,128], index: 3, kind: input, shape index: {}]
  %s4 = inlined_call_operand.hbm [shape: f32[16,128], index: 4, kind: output, shape index: {}]
  %s5 = sld [smem:[#allocation0]]
  $region26: #{tpu_custom_call.1} parent=0
    _
  %s7 = ssub.s32 1, %s5
  %s8 = scalar_select 0, %s7, %s5
  $region1: #{tpu_custom_call.1} parent=0
    #allocation2 [shape = 'u8[8192]{0}', space=vmem, size = 0x2000, scoped, tag = 'output window, operand 0, single buffered']
    #allocation3 [shape = 's32[1]{0}', space=sflag, size = 0x4, scoped, tag = 'scoped memory for tpu_custom_call.1']
    %9 = vsyncpa [#allocation3], 0
    // Predicated region
    $region2: #{tpu_custom_call.1} parent=1 // pred_check
      _
    $region3: #{tpu_custom_call.1} parent=1 // pred_check_branch
      %11 = sbr.rel (0) target = $region5
    $region4: #{tpu_custom_call.1} parent=1 // pred_region
      _
    $region5: #{tpu_custom_call.1} parent=1 // pred_fallthru
      _
    // Predicated region
    $region6: #{tpu_custom_call.1} parent=1 // pred_check
      _
    $region7: #{tpu_custom_call.1} parent=1 // pred_check_branch
      %13 = sbr.rel (0) target = $region9
    $region8: #{tpu_custom_call.1} parent=1 // pred_region
      _
    $region9: #{tpu_custom_call.1} parent=1 // pred_fallthru
      _
    // Predicated region
    $region10: #{tpu_custom_call.1} parent=1 // pred_check
      _
    $region11: #{tpu_custom_call.1} parent=1 // pred_check_branch
      %15 = sbr.rel (0) target = $region13
    $region12: #{tpu_custom_call.1} parent=1 // pred_region
      _
    $region13: #{tpu_custom_call.1} parent=1 // pred_fallthru
      _
    // Predicated region
    $region14: #{tpu_custom_call.1} parent=1 // pred_check
      _
    $region15: #{tpu_custom_call.1} parent=1 // pred_check_branch
      %17 = sbr.rel (0) target = $region17
    $region16: #{tpu_custom_call.1} parent=1 // pred_region
      _
    $region17: #{tpu_custom_call.1} parent=1 // pred_fallthru
      _
    %v18 = vld [vmem:[%s0] sm:$0xff]
    %v19 = vld [vmem:[%s0 + $0x8] sm:$0xff]
    %v20 = vld [vmem:[%s1] sm:$0xf]
    %v21 = vld [vmem:[%s2] sm:$0x1]
    %v23 = vlaneseq
    %v24 = vshrl.u32 %v23, 7
    %v25 = vsub.s32 0, %v24
    %v26 = vrot.slane %v21, %v25
    %vm28 = vcmask 31744
    %v30 = vsel %vm28, %v18, 0
    %v33 = vsel %vm28, %v19, 0
    %vm35 = vcmask 1043456
    %v37 = vsel %vm35, %v20, 0
    %39 = vmatprep.subr.mxu0 0.0
    %40 = vmatpush1.msra.mxu0 0.0
    %41 = vmatprep.subr.mxu0 0.0
    %42 = vmatpush1.msra.mxu0 0.0
    %43 = vmatprep.subr.mxu0 0.0
    %44 = vmatpush1.msra.mxu0 0.0
    %45 = vmatprep.subr.mxu0 0.0
    %46 = vmatpush1.msra.mxu0 0.0
    %47 = vmatprep.subr.mxu0 0.0
    %48 = vmatpush1.msra.mxu0 0.0
    %49 = vmatprep.subr.mxu0 0.0
    %50 = vmatpush1.msra.mxu0 0.0
    %51 = vmatprep.subr.mxu0 0.0
    %52 = vmatpush1.msra.mxu0 0.0
    %53 = vmatprep.subr.mxu0 0.0
    %54 = vmatpush1.msra.mxu0 0.0
    %55 = vmatprep.subr.mxu0 0.0
    %56 = vmatpush1.msra.mxu0 0.0
    %57 = vmatprep.subr.mxu0 0.0
    %58 = vmatpush1.msra.mxu0 0.0
    %59 = vmatprep.subr.mxu0 0.0
    %60 = vmatpush1.msra.mxu0 0.0
    %61 = vmatprep.subr.mxu0 0.0
    %62 = vmatpush1.msra.mxu0 0.0
    %63 = vmatprep.subr.mxu0 0.0
    %64 = vmatpush1.msra.mxu0 0.0
    %65 = vmatprep.subr.mxu0 0.0
    %66 = vmatpush1.msra.mxu0 0.0
    %67 = vmatprep.subr.mxu0 0.0
    %68 = vmatpush1.msra.mxu0 0.0
    %69 = vmatprep.subr.mxu0 0.0
    %70 = vmatpush1.msra.mxu0 %v37
    %71 = vmatprep.subr.mxu0 0.0
    %72 = vmatpush2.msra.mxu0 0.0
    %73 = vmatprep.subr.mxu0 0.0
    %74 = vmatpush2.msra.mxu0 0.0
    %75 = vmatprep.subr.mxu0 0.0
    %76 = vmatpush2.msra.mxu0 0.0
    %77 = vmatprep.subr.mxu0 0.0
    %78 = vmatpush2.msra.mxu0 0.0
    %79 = vmatprep.subr.mxu0 0.0
    %80 = vmatpush2.msra.mxu0 0.0
    %81 = vmatprep.subr.mxu0 0.0
    %82 = vmatpush2.msra.mxu0 0.0
    %83 = vmatprep.subr.mxu0 0.0
    %84 = vmatpush2.msra.mxu0 0.0
    %85 = vmatprep.subr.mxu0 0.0
    %86 = vmatpush2.msra.mxu0 0.0
    %87 = vmatprep.subr.mxu0 0.0
    %88 = vmatpush2.msra.mxu0 0.0
    %89 = vmatprep.subr.mxu0 0.0
    %90 = vmatpush2.msra.mxu0 0.0
    %91 = vmatprep.subr.mxu0 0.0
    %92 = vmatpush2.msra.mxu0 0.0
    %93 = vmatprep.subr.mxu0 0.0
    %94 = vmatpush2.msra.mxu0 0.0
    %95 = vmatprep.subr.mxu0 0.0
    %96 = vmatpush2.msra.mxu0 0.0
    %97 = vmatprep.subr.mxu0 0.0
    %98 = vmatpush2.msra.mxu0 0.0
    %99 = vmatprep.subr.mxu0 0.0
    %100 = vmatpush2.msra.mxu0 0.0
    %101 = vmatprep.subr.mxu0 0.0
    %102 = vmatpush2.msra.mxu0 0.0
    %103 = vmatprep.mubr.f32.mxu0 0.0
    %104 = vmatmul.mubr.f32.gmra.mxu0 %v30
    %v105 = vpop.f32.mrf.mxu0
    %v106 = vadd.f32 %v26, %v105
    %v107 = vpop.f32.mrf.mxu0
    %108 = vmatprep.mubr.f32.mxu0 0.0
    %109 = vmatmul.mubr.f32.gmra.mxu0 %v33
    %v110 = vpop.f32.mrf.mxu0
    %v111 = vadd.f32 %v26, %v110
    %v112 = vpop.f32.mrf.mxu0
    %113 = vdwg.mxu0
    %v114 = vld [vmem:[%s3] sm:$0x1]
    %vm115 = vcmp.ne.f32.partialorder %v114, 0.0
    %v116 = vand.u32 2147483647, %v106
    %vm117 = vcmp.le.f32.partialorder %v116, 0.7853982
    %vm118 = vcmp.lt.s32.totalorder %v106, 0
    %v119 = vand.u32 %v106, 2139095040
    %v120 = vshrl.u32 %v119, 23
    %v121 = vsub.s32 %v120, 127
    %v122 = vand.u32 2147483647, %v106
    %v123 = vand.u32 %v122, 8388607
    %v124 = vor.u32 %v123, 8388608
    %v125 = vsub.s32 0, %v124
    %v126 = vadd.s32 %v121, 1
    %vm127 = vcmp.gt.s32.totalorder %v126, 0
    %v128 = vsel %vm127, %v126, 0
    %v129 = vshrl.u32 %v128, 5
    %v130 = vand.u32 %v128, 31
    %v131 = vsub.s32 32, %v130
    %v132 = vshrl.u32 683565275, %v131
    %v133 = vshll.u32 683565275, %v130
    %v134 = vshrl.u32 2475754826, %v131
    %v135 = vor.u32 %v133, %v134
    %v136 = vshll.u32 2475754826, %v130
    %v137 = vshrl.u32 2131351028, %v131
    %v138 = vor.u32 %v136, %v137
    %v139 = vshll.u32 2131351028, %v130
    %v140 = vshrl.u32 2102212464, %v131
    %v141 = vor.u32 %v139, %v140
    %v142 = vshll.u32 2102212464, %v130
    %v143 = vshrl.u32 920167782, %v131
    %v144 = vor.u32 %v142, %v143
    %v145 = vshll.u32 920167782, %v130
    %v146 = vshrl.u32 1326507024, %v131
    %v147 = vor.u32 %v145, %v146
    %vm148 = vcmp.lt.s32.totalorder %v129, 1
    %vm149 = vcmp.lt.s32.totalorder %v129, 2
    %vm150 = vcmp.lt.s32.totalorder %v129, 3
    %vm151 = vcmp.lt.s32.totalorder %v129, 4
    %v152 = vsel %vm148, %v132, %v135
    %v153 = vsel %vm151, %v141, 2102212464
    %v154 = vsel %vm150, %v138, %v153
    %v155 = vsel %vm149, %v152, %v154
    %v156 = vsel %vm148, %v135, %v138
    %v157 = vsel %vm151, %v144, 920167782
    %v158 = vsel %vm150, %v141, %v157
    %v159 = vsel %vm149, %v156, %v158
    %v160 = vsel %vm148, %v138, %v141
    %v161 = vsel %vm151, %v147, 1326507024
    %v162 = vsel %vm150, %v144, %v161
    %v163 = vsel %vm149, %v160, %v162
    %v164 = vshll.u32 %v124, 8
    %v165 = vmul.u32.u64.compose %v164, %v163
    %v166 = vextract.low.u32 %v165
    %v167 = vextract.high.u32 %v165
    %v168 = vmul.u32.u64.compose %v164, %v159
    %v169 = vextract.low.u32 %v168
    %v170 = vextract.high.u32 %v168
    %v171 = vmul.u32 %v164, %v155
    %v172 = vadd.s32 %v167, %v169
    %vm173 = vc.u32 %v167, %v169
    %v174 = vadd.s32 %v170, 1
    %v175 = vsel %vm173, %v174, %v170
    %v176 = vadd.s32 %v171, %v175
    %v177 = vadd.s32 %v176, 536870912
    %v178 = vshrl.u32 %v177, 30
    %v179 = vshll.u32 %v178, 30
    %v180 = vsub.s32 %v176, %v179
    %vm181 = vcmp.lt.s32.totalorder %v180, 0
    %v182 = vsub.s32 0, %v180
    %v183 = vsel %vm181, %v182, %v180
    %v184 = vclz %v183
    %v185 = vsub.s32 %v184, 2
    %vm186 = vcmp.gt.s32.totalorder 0, %v185
    %v187 = vsel %vm186, 0, %v185
    %v188 = vsub.s32 32, %v187
    %v189 = vshll.u32 %v180, %v187
    %v190 = vshrl.u32 %v172, %v188
    %v191 = vor.u32 %v189, %v190
    %v192 = vsub.s32 4294967266, %v187
    %v193 = vadd.s32 %v192, 127
    %v194 = vshll.u32 %v193, 23
    %v195 = vor.u32 4788187, %v194
    %v196 = vand.u32 2147483647, %v195
    %v198 = vcvt.s32.f32 %v191
    %v199 = vmul.f32 %v198, %v196
    %v200 = vxor.u32 %v199, 2147483648
    %v201 = vsel %vm118, %v200, %v199
    %v202 = vsub.s32 4, %v178
    %v203 = vsel %vm118, %v202, %v178
    %v204 = vsel %vm117, %v106, %v201
    %v205 = vsel %vm117, 0, %v203
    %v206 = vcosq.f32.pop %v204
    %v207 = vsinq.f32.pop %v204
    %vm208 = vweird.f32 %v106
    %v209 = vand.u32 %v205, 3
    %vm210 = vcmp.lt.s32.totalorder %v209, 2
    %vm211 = vcmp.eq.s32.totalorder %v209, 0
    %v212 = vxor.u32 %v207, 2147483648
    %v213 = vsel %vm211, %v206, %v212
    %vm214 = vcmp.eq.s32.totalorder %v209, 2
    %v215 = vxor.u32 %v206, 2147483648
    %v216 = vsel %vm214, %v215, %v207
    %v217 = vsel %vm210, %v213, %v216
    %v218 = vsel %vm208, nan, %v217
    %v219 = vand.u32 2147483647, %v111
    %vm220 = vcmp.le.f32.partialorder %v219, 0.7853982
    %vm221 = vcmp.lt.s32.totalorder %v111, 0
    %v222 = vand.u32 %v111, 2139095040
    %v223 = vshrl.u32 %v222, 23
    %v224 = vsub.s32 %v223, 127
    %v225 = vand.u32 2147483647, %v111
    %v226 = vand.u32 %v225, 8388607
    %v227 = vor.u32 %v226, 8388608
    %v228 = vsub.s32 0, %v227
    %v229 = vadd.s32 %v224, 1
    %vm230 = vcmp.gt.s32.totalorder %v229, 0
    %v231 = vsel %vm230, %v229, 0
    %v232 = vshrl.u32 %v231, 5
    %v233 = vand.u32 %v231, 31
    %v234 = vsub.s32 32, %v233
    %v235 = vshrl.u32 683565275, %v234
    %v236 = vshll.u32 683565275, %v233
    %v237 = vshrl.u32 2475754826, %v234
    %v238 = vor.u32 %v236, %v237
    %v239 = vshll.u32 2475754826, %v233
    %v240 = vshrl.u32 2131351028, %v234
    %v241 = vor.u32 %v239, %v240
    %v242 = vshll.u32 2131351028, %v233
    %v243 = vshrl.u32 2102212464, %v234
    %v244 = vor.u32 %v242, %v243
    %v245 = vshll.u32 2102212464, %v233
    %v246 = vshrl.u32 920167782, %v234
    %v247 = vor.u32 %v245, %v246
    %v248 = vshll.u32 920167782, %v233
    %v249 = vshrl.u32 1326507024, %v234
    %v250 = vor.u32 %v248, %v249
    %vm251 = vcmp.lt.s32.totalorder %v232, 1
    %vm252 = vcmp.lt.s32.totalorder %v232, 2
    %vm253 = vcmp.lt.s32.totalorder %v232, 3
    %vm254 = vcmp.lt.s32.totalorder %v232, 4
    %v255 = vsel %vm251, %v235, %v238
    %v256 = vsel %vm254, %v244, 2102212464
    %v257 = vsel %vm253, %v241, %v256
    %v258 = vsel %vm252, %v255, %v257
    %v259 = vsel %vm251, %v238, %v241
    %v260 = vsel %vm254, %v247, 920167782
    %v261 = vsel %vm253, %v244, %v260
    %v262 = vsel %vm252, %v259, %v261
    %v263 = vsel %vm251, %v241, %v244
    %v264 = vsel %vm254, %v250, 1326507024
    %v265 = vsel %vm253, %v247, %v264
    %v266 = vsel %vm252, %v263, %v265
    %v267 = vshll.u32 %v227, 8
    %v268 = vmul.u32.u64.compose %v267, %v266
    %v269 = vextract.low.u32 %v268
    %v270 = vextract.high.u32 %v268
    %v271 = vmul.u32.u64.compose %v267, %v262
    %v272 = vextract.low.u32 %v271
    %v273 = vextract.high.u32 %v271
    %v274 = vmul.u32 %v267, %v258
    %v275 = vadd.s32 %v270, %v272
    %vm276 = vc.u32 %v270, %v272
    %v277 = vadd.s32 %v273, 1
    %v278 = vsel %vm276, %v277, %v273
    %v279 = vadd.s32 %v274, %v278
    %v280 = vadd.s32 %v279, 536870912
    %v281 = vshrl.u32 %v280, 30
    %v282 = vshll.u32 %v281, 30
    %v283 = vsub.s32 %v279, %v282
    %vm284 = vcmp.lt.s32.totalorder %v283, 0
    %v285 = vsub.s32 0, %v283
    %v286 = vsel %vm284, %v285, %v283
    %v287 = vclz %v286
    %v288 = vsub.s32 %v287, 2
    %vm289 = vcmp.gt.s32.totalorder 0, %v288
    %v290 = vsel %vm289, 0, %v288
    %v291 = vsub.s32 32, %v290
    %v292 = vshll.u32 %v283, %v290
    %v293 = vshrl.u32 %v275, %v291
    %v294 = vor.u32 %v292, %v293
    %v295 = vsub.s32 4294967266, %v290
    %v296 = vadd.s32 %v295, 127
    %v297 = vshll.u32 %v296, 23
    %v298 = vor.u32 4788187, %v297
    %v299 = vand.u32 2147483647, %v298
    %v301 = vcvt.s32.f32 %v294
    %v302 = vmul.f32 %v301, %v299
    %v303 = vxor.u32 %v302, 2147483648
    %v304 = vsel %vm221, %v303, %v302
    %v305 = vsub.s32 4, %v281
    %v306 = vsel %vm221, %v305, %v281
    %v307 = vsel %vm220, %v111, %v304
    %v308 = vsel %vm220, 0, %v306
    %v309 = vcosq.f32.pop %v307
    %v310 = vsinq.f32.pop %v307
    %vm311 = vweird.f32 %v111
    %v312 = vand.u32 %v308, 3
    %vm313 = vcmp.lt.s32.totalorder %v312, 2
    %vm314 = vcmp.eq.s32.totalorder %v312, 0
    %v315 = vxor.u32 %v310, 2147483648
    %v316 = vsel %vm314, %v309, %v315
    %vm317 = vcmp.eq.s32.totalorder %v312, 2
    %v318 = vxor.u32 %v309, 2147483648
    %v319 = vsel %vm317, %v318, %v310
    %v320 = vsel %vm313, %v316, %v319
    %v321 = vsel %vm311, nan, %v320
    %v322 = vsel %vm115, 1, 0
    %v323 = vlaneseq
    %v324 = vshrl.u32 %v323, 7
    %v325 = vsub.s32 0, %v324
    %v326 = vrot.slane %v322, %v325
    %vm327 = vcmp.eq.s32.totalorder %v326, 1
    %v328 = vsel %vm327, %v218, %v106
    %v329 = vsel %vm327, %v321, %v111
    %330 = vst [vmem:[#allocation2] sm:$0xff] %v328
    %331 = vst [vmem:[#allocation2 + $0x8] sm:$0xff] %v329
    // Predicated region
    $region18: #{tpu_custom_call.1} parent=1 // pred_check
      _
    $region19: #{tpu_custom_call.1} parent=1 // pred_check_branch
      %333 = sbr.rel (0) target = $region21
    $region20: #{tpu_custom_call.1} parent=1 // pred_region
      %s335 = ssub.s32 256, 256
      %336 = vsyncadd [#allocation3], %s335
      %s337 = sshll.u32 [#allocation2], 4
      %s338 = int_to_ptr.vmem [resolvable:$true] %s337
      %343 = dma.vmem_to_hbm [thread:$0]  %s338, 256, %s4, [#allocation3], 128, 128, 8
    $region21: #{tpu_custom_call.1} parent=1 // pred_fallthru
      _
    // Predicated region
    $region22: #{tpu_custom_call.1} parent=1 // pred_check
      _
    $region23: #{tpu_custom_call.1} parent=1 // pred_check_branch
      %345 = sbr.rel (0) target = $region25
    $region24: #{tpu_custom_call.1} parent=1 // pred_region
      %346 = dma.done [#allocation3], 256
    $region25: #{tpu_custom_call.1} parent=1 // pred_fallthru
      _
    %347 = vsyncpa [#allocation3], 1

</llo_original>
